<compile_context>
chip_gen: v7x
topology: tpu7x:2x2x1
jax: 0.10.0
libtpu: 0.0.40
codegen_flags: <defaults>
</compile_context>

<pallas_src>
import jax
import jax.numpy as jnp
from jax import lax
from jax.experimental import pallas as pl
from jax.experimental.pallas import tpu as pltpu


def _round_up(x, m):
    return (x + m - 1) // m * m


def _fused_lookup_kernel(idx_ref, fused_ref, bias_ref, o_ref):
    # Per grid step:
    #   idx_ref  : (blk, 1)   int32  token ids (padded rows hold id 0)
    #   fused_ref: (V, OUT)   f32    fused table  E @ W^T
    #   bias_ref : (1, OUT)   f32
    #   o_ref    : (blk, OUT) f32
    # Embedding + Linear collapses to a row-gather from the fused table plus bias.
    # The gather is a V-way select-accumulate on the VPU (V = 10), keeping the MXU idle.
    idx = idx_ref[...]                                           # (blk, 1)
    acc = jnp.broadcast_to(bias_ref[...], o_ref.shape).astype(jnp.float32)
    num_tokens = fused_ref.shape[0]
    for tok in range(num_tokens):                                # static, fully unrolled
        row = fused_ref[tok:tok + 1, :]                          # (1, OUT)
        sel = (idx == tok).astype(jnp.float32)                   # (blk, 1)
        acc = acc + sel * row                                    # VPU select-accumulate
    o_ref[...] = acc.astype(o_ref.dtype)
    # NOTE: out-of-range / negative ids produce a bias-only row (zero embedding)
    # rather than an error, same as the previous version.


def embedding_model_forward(x, emb_weight, lin_weight, lin_bias, *, block_rows=512):
    """x: (B, S) token ids (any dtype; cast to int32 like the PyTorch forward).
    emb_weight: (V, D); lin_weight: (OUT, D); lin_bias: (1, OUT) or (OUT,).
    Returns (B, S, OUT) float32."""
    b, s = x.shape
    v, d = emb_weight.shape
    out_f = lin_weight.shape[0]
    bs = b * s

    # Fuse Embedding @ Linear outside the kernel (input-independent, const-folded per
    # weight set).  Contract on D directly — no explicit transpose op in the wrapper.
    fused = lax.dot_general(
        emb_weight.astype(jnp.float32), lin_weight.astype(jnp.float32),
        dimension_numbers=(((1,), (1,)), ((), ())),
        preferred_element_type=jnp.float32)                      # (V, OUT)
    bias = lin_bias.astype(jnp.float32).reshape(1, out_f)

    idx = x.astype(jnp.int32).reshape(bs, 1)

    # Row tiling: multiple of 8 sublanes, up to `block_rows` per grid step.
    blk = min(_round_up(block_rows, 8), _round_up(bs, 8))
    bs_pad = _round_up(bs, blk)
    if bs_pad != bs:
        idx = jnp.pad(idx, ((0, bs_pad - bs), (0, 0)))           # pad rows use id 0

    out_flat = pl.pallas_call(
        _fused_lookup_kernel,
        out_shape=jax.ShapeDtypeStruct((bs_pad, out_f), jnp.float32),
        grid=(bs_pad // blk,),
        in_specs=[
            pl.BlockSpec((blk, 1), lambda i: (i, 0)),            # ids, tiled over rows
            pl.BlockSpec((v, out_f), lambda i: (0, 0)),          # fused table, resident
            pl.BlockSpec((1, out_f), lambda i: (0, 0)),          # bias, resident
        ],
        out_specs=pl.BlockSpec((blk, out_f), lambda i: (i, 0)),
        compiler_params=pltpu.CompilerParams(
            dimension_semantics=("parallel",)),                  # v7x: 2 TCs share rows
    )(idx, fused, bias)

    return out_flat[:bs].reshape(b, s, out_f)


if __name__ == "__main__":
    # Module constants: INPUT_SIZE=[1,10], EMBEDDING_SHAPE=[10,20], MATMUL_W_SHAPE=[5,20].
    V, D = 10, 20
    OUT = 5
    B, S = 1, 10

    key = jax.random.PRNGKey(0)
    k_emb, k_w, k_b, k_x = jax.random.split(key, 4)
    emb_weight = jax.random.normal(k_emb, (V, D), dtype=jnp.float32)
    lin_weight = jax.random.normal(k_w, (OUT, D), dtype=jnp.float32)
    lin_bias = jax.random.normal(k_b, (1, OUT), dtype=jnp.float32)
    # Float input holding integer ids; the forward casts to int32 like the PyTorch module.
    x = jax.random.randint(k_x, (B, S), 0, V, dtype=jnp.int32).astype(jnp.float32)

    out = jax.block_until_ready(embedding_model_forward(x, emb_weight, lin_weight, lin_bias))

    # Pure-JAX reference: embedding gather + linear (x @ W.T + b).
    x_int = x.astype(jnp.int32)
    ref = emb_weight[x_int] @ lin_weight.T + lin_bias.reshape(1, 1, OUT)

    assert out.shape == (B, S, OUT), out.shape
    assert jnp.allclose(out, ref, atol=1e-5, rtol=1e-5), float(jnp.abs(out - ref).max())
    print("KERNEL_OK")
</pallas_src>

<mosaic_0001>
module attributes {stable_mosaic.version = 11 : i64} {
  func.func @_fused_lookup_kernel(%arg0: i32, %arg1: memref<16x1xi32, #tpu.memory_space<vmem>>, %arg2: memref<10x5xf32, #tpu.memory_space<vmem>>, %arg3: memref<1x5xf32, #tpu.memory_space<vmem>>, %arg4: memref<16x5xf32, #tpu.memory_space<vmem>>) attributes {dimension_semantics = [#tpu.dimension_semantics<parallel>], iteration_bounds = array<i64: 1>, scalar_prefetch = 0 : i64, scratch_operands = 0 : i64, tpu.core_type = #tpu.core_type<tc>, window_params = [{transform_indices = @transform_0, window_bounds = array<i64: 16, 1>}, {pipeline_mode = #tpu.pipeline_mode<synchronous>, transform_indices = @transform_1, window_bounds = array<i64: 10, 5>}, {pipeline_mode = #tpu.pipeline_mode<synchronous>, transform_indices = @transform_2, window_bounds = array<i64: 1, 5>}, {transform_indices = @transform_3, window_bounds = array<i64: 16, 5>}]} {
    %c0 = arith.constant 0 : index
    %c0_0 = arith.constant 0 : index
    %0 = vector.load %arg1[%c0, %c0_0] : memref<16x1xi32, #tpu.memory_space<vmem>>, vector<16x1xi32>
    %c0_1 = arith.constant 0 : index
    %c0_2 = arith.constant 0 : index
    %1 = vector.load %arg3[%c0_1, %c0_2] : memref<1x5xf32, #tpu.memory_space<vmem>>, vector<1x5xf32>
    %2 = vector.shape_cast %1 : vector<1x5xf32> to vector<1x5xf32>
    %3 = vector.broadcast %2 : vector<1x5xf32> to vector<16x5xf32>
    %c0_3 = arith.constant 0 : index
    %c0_4 = arith.constant 0 : index
    %4 = vector.load %arg2[%c0_3, %c0_4] : memref<10x5xf32, #tpu.memory_space<vmem>>, vector<1x5xf32>
    %c0_i32 = arith.constant 0 : i32
    %5 = vector.broadcast %c0_i32 : i32 to vector<16x1xi32>
    %6 = arith.cmpi eq, %0, %5 : vector<16x1xi32>
    %7 = arith.extui %6 : vector<16x1xi1> to vector<16x1xi32>
    %8 = arith.sitofp %7 : vector<16x1xi32> to vector<16x1xf32>
    %9 = vector.broadcast %8 : vector<16x1xf32> to vector<16x5xf32>
    %10 = vector.broadcast %4 : vector<1x5xf32> to vector<16x5xf32>
    %11 = arith.mulf %9, %10 : vector<16x5xf32>
    %12 = arith.addf %3, %11 : vector<16x5xf32>
    %c1 = arith.constant 1 : index
    %c0_5 = arith.constant 0 : index
    %13 = vector.load %arg2[%c1, %c0_5] : memref<10x5xf32, #tpu.memory_space<vmem>>, vector<1x5xf32>
    %c1_i32 = arith.constant 1 : i32
    %14 = vector.broadcast %c1_i32 : i32 to vector<16x1xi32>
    %15 = arith.cmpi eq, %0, %14 : vector<16x1xi32>
    %16 = arith.extui %15 : vector<16x1xi1> to vector<16x1xi32>
    %17 = arith.sitofp %16 : vector<16x1xi32> to vector<16x1xf32>
    %18 = vector.broadcast %17 : vector<16x1xf32> to vector<16x5xf32>
    %19 = vector.broadcast %13 : vector<1x5xf32> to vector<16x5xf32>
    %20 = arith.mulf %18, %19 : vector<16x5xf32>
    %21 = arith.addf %12, %20 : vector<16x5xf32>
    %c2 = arith.constant 2 : index
    %c0_6 = arith.constant 0 : index
    %22 = vector.load %arg2[%c2, %c0_6] : memref<10x5xf32, #tpu.memory_space<vmem>>, vector<1x5xf32>
    %c2_i32 = arith.constant 2 : i32
    %23 = vector.broadcast %c2_i32 : i32 to vector<16x1xi32>
    %24 = arith.cmpi eq, %0, %23 : vector<16x1xi32>
    %25 = arith.extui %24 : vector<16x1xi1> to vector<16x1xi32>
    %26 = arith.sitofp %25 : vector<16x1xi32> to vector<16x1xf32>
    %27 = vector.broadcast %26 : vector<16x1xf32> to vector<16x5xf32>
    %28 = vector.broadcast %22 : vector<1x5xf32> to vector<16x5xf32>
    %29 = arith.mulf %27, %28 : vector<16x5xf32>
    %30 = arith.addf %21, %29 : vector<16x5xf32>
    %c3 = arith.constant 3 : index
    %c0_7 = arith.constant 0 : index
    %31 = vector.load %arg2[%c3, %c0_7] : memref<10x5xf32, #tpu.memory_space<vmem>>, vector<1x5xf32>
    %c3_i32 = arith.constant 3 : i32
    %32 = vector.broadcast %c3_i32 : i32 to vector<16x1xi32>
    %33 = arith.cmpi eq, %0, %32 : vector<16x1xi32>
    %34 = arith.extui %33 : vector<16x1xi1> to vector<16x1xi32>
    %35 = arith.sitofp %34 : vector<16x1xi32> to vector<16x1xf32>
    %36 = vector.broadcast %35 : vector<16x1xf32> to vector<16x5xf32>
    %37 = vector.broadcast %31 : vector<1x5xf32> to vector<16x5xf32>
    %38 = arith.mulf %36, %37 : vector<16x5xf32>
    %39 = arith.addf %30, %38 : vector<16x5xf32>
    %c4 = arith.constant 4 : index
    %c0_8 = arith.constant 0 : index
    %40 = vector.load %arg2[%c4, %c0_8] : memref<10x5xf32, #tpu.memory_space<vmem>>, vector<1x5xf32>
    %c4_i32 = arith.constant 4 : i32
    %41 = vector.broadcast %c4_i32 : i32 to vector<16x1xi32>
    %42 = arith.cmpi eq, %0, %41 : vector<16x1xi32>
    %43 = arith.extui %42 : vector<16x1xi1> to vector<16x1xi32>
    %44 = arith.sitofp %43 : vector<16x1xi32> to vector<16x1xf32>
    %45 = vector.broadcast %44 : vector<16x1xf32> to vector<16x5xf32>
    %46 = vector.broadcast %40 : vector<1x5xf32> to vector<16x5xf32>
    %47 = arith.mulf %45, %46 : vector<16x5xf32>
    %48 = arith.addf %39, %47 : vector<16x5xf32>
    %c5 = arith.constant 5 : index
    %c0_9 = arith.constant 0 : index
    %49 = vector.load %arg2[%c5, %c0_9] : memref<10x5xf32, #tpu.memory_space<vmem>>, vector<1x5xf32>
    %c5_i32 = arith.constant 5 : i32
    %50 = vector.broadcast %c5_i32 : i32 to vector<16x1xi32>
    %51 = arith.cmpi eq, %0, %50 : vector<16x1xi32>
    %52 = arith.extui %51 : vector<16x1xi1> to vector<16x1xi32>
    %53 = arith.sitofp %52 : vector<16x1xi32> to vector<16x1xf32>
    %54 = vector.broadcast %53 : vector<16x1xf32> to vector<16x5xf32>
    %55 = vector.broadcast %49 : vector<1x5xf32> to vector<16x5xf32>
    %56 = arith.mulf %54, %55 : vector<16x5xf32>
    %57 = arith.addf %48, %56 : vector<16x5xf32>
    %c6 = arith.constant 6 : index
    %c0_10 = arith.constant 0 : index
    %58 = vector.load %arg2[%c6, %c0_10] : memref<10x5xf32, #tpu.memory_space<vmem>>, vector<1x5xf32>
    %c6_i32 = arith.constant 6 : i32
    %59 = vector.broadcast %c6_i32 : i32 to vector<16x1xi32>
    %60 = arith.cmpi eq, %0, %59 : vector<16x1xi32>
    %61 = arith.extui %60 : vector<16x1xi1> to vector<16x1xi32>
    %62 = arith.sitofp %61 : vector<16x1xi32> to vector<16x1xf32>
    %63 = vector.broadcast %62 : vector<16x1xf32> to vector<16x5xf32>
    %64 = vector.broadcast %58 : vector<1x5xf32> to vector<16x5xf32>
    %65 = arith.mulf %63, %64 : vector<16x5xf32>
    %66 = arith.addf %57, %65 : vector<16x5xf32>
    %c7 = arith.constant 7 : index
    %c0_11 = arith.constant 0 : index
    %67 = vector.load %arg2[%c7, %c0_11] : memref<10x5xf32, #tpu.memory_space<vmem>>, vector<1x5xf32>
    %c7_i32 = arith.constant 7 : i32
    %68 = vector.broadcast %c7_i32 : i32 to vector<16x1xi32>
    %69 = arith.cmpi eq, %0, %68 : vector<16x1xi32>
    %70 = arith.extui %69 : vector<16x1xi1> to vector<16x1xi32>
    %71 = arith.sitofp %70 : vector<16x1xi32> to vector<16x1xf32>
    %72 = vector.broadcast %71 : vector<16x1xf32> to vector<16x5xf32>
    %73 = vector.broadcast %67 : vector<1x5xf32> to vector<16x5xf32>
    %74 = arith.mulf %72, %73 : vector<16x5xf32>
    %75 = arith.addf %66, %74 : vector<16x5xf32>
    %c8 = arith.constant 8 : index
    %c0_12 = arith.constant 0 : index
    %76 = vector.load %arg2[%c8, %c0_12] : memref<10x5xf32, #tpu.memory_space<vmem>>, vector<1x5xf32>
    %c8_i32 = arith.constant 8 : i32
    %77 = vector.broadcast %c8_i32 : i32 to vector<16x1xi32>
    %78 = arith.cmpi eq, %0, %77 : vector<16x1xi32>
    %79 = arith.extui %78 : vector<16x1xi1> to vector<16x1xi32>
    %80 = arith.sitofp %79 : vector<16x1xi32> to vector<16x1xf32>
    %81 = vector.broadcast %80 : vector<16x1xf32> to vector<16x5xf32>
    %82 = vector.broadcast %76 : vector<1x5xf32> to vector<16x5xf32>
    %83 = arith.mulf %81, %82 : vector<16x5xf32>
    %84 = arith.addf %75, %83 : vector<16x5xf32>
    %c9 = arith.constant 9 : index
    %c0_13 = arith.constant 0 : index
    %85 = vector.load %arg2[%c9, %c0_13] : memref<10x5xf32, #tpu.memory_space<vmem>>, vector<1x5xf32>
    %c9_i32 = arith.constant 9 : i32
    %86 = vector.broadcast %c9_i32 : i32 to vector<16x1xi32>
    %87 = arith.cmpi eq, %0, %86 : vector<16x1xi32>
    %88 = arith.extui %87 : vector<16x1xi1> to vector<16x1xi32>
    %89 = arith.sitofp %88 : vector<16x1xi32> to vector<16x1xf32>
    %90 = vector.broadcast %89 : vector<16x1xf32> to vector<16x5xf32>
    %91 = vector.broadcast %85 : vector<1x5xf32> to vector<16x5xf32>
    %92 = arith.mulf %90, %91 : vector<16x5xf32>
    %93 = arith.addf %84, %92 : vector<16x5xf32>
    %c0_14 = arith.constant 0 : index
    %c0_15 = arith.constant 0 : index
    %94 = vector.load %arg4[%c0_14, %c0_15] : memref<16x5xf32, #tpu.memory_space<vmem>>, vector<16x5xf32>
    tpu.vector_store %arg4[%c0_14, %c0_15], %93 {strides = array<i32>} : memref<16x5xf32, #tpu.memory_space<vmem>>, vector<16x5xf32>,
    return
  }
  func.func @transform_0(%arg0: i32) -> (i32, i32) {
    %c0_i32 = arith.constant 0 : i32
    %c0_i32_0 = arith.constant 0 : i32
    return %arg0, %c0_i32 : i32, i32
  }
  func.func @transform_1(%arg0: i32) -> (i32, i32) {
    %c0_i32 = arith.constant 0 : i32
    %c0_i32_0 = arith.constant 0 : i32
    %c0_i32_1 = arith.constant 0 : i32
    return %c0_i32, %c0_i32_0 : i32, i32
  }
  func.func @transform_2(%arg0: i32) -> (i32, i32) {
    %c0_i32 = arith.constant 0 : i32
    %c0_i32_0 = arith.constant 0 : i32
    %c0_i32_1 = arith.constant 0 : i32
    return %c0_i32, %c0_i32_0 : i32, i32
  }
  func.func @transform_3(%arg0: i32) -> (i32, i32) {
    %c0_i32 = arith.constant 0 : i32
    %c0_i32_0 = arith.constant 0 : i32
    return %arg0, %c0_i32 : i32, i32
  }
}

</mosaic_0001>

<llo_original>
// kernel: tpu_custom_call.1
$region0: #{tpu_custom_call.1}
  #allocation0 [shape = 'u32[]', space=smem, size = 0x4, offset = 0x4, fixed_abs, tag = 'smem constant byte address 0x4 - core index']
  #allocation1 [shape = 'u32[144,128]{1,0:T(1,128)}', space=vmem, size = 0x12000, scoped, tag = 'internal scratch']
  %s0 = inlined_call_operand.vmem [shape: s32[16,1], index: 0, kind: input, shape index: {}]
  %s1 = inlined_call_operand.vmem [shape: f32[10,5], index: 1, kind: input, shape index: {}]
  %s2 = inlined_call_operand.vmem [shape: f32[1,5], index: 2, kind: input, shape index: {}]
  %s3 = inlined_call_operand.vmem [shape: f32[16,5], index: 3, kind: output, shape index: {}]
  %s4 = sld [smem:[#allocation0]]
  $region22: #{tpu_custom_call.1} parent=0
    _
  %s6 = ssub.s32 1, %s4
  %s7 = scalar_select 0, %s6, %s4
  // Predicated region
  $region2: #{tpu_custom_call.1} parent=0 // pred_check
    _
  $region3: #{tpu_custom_call.1} parent=0 // pred_check_branch
    %9 = sbr.rel (0) target = $region5
  $region4: #{tpu_custom_call.1} parent=0 // pred_region
    _
  $region5: #{tpu_custom_call.1} parent=0 // pred_fallthru
    _
  // Predicated region
  $region6: #{tpu_custom_call.1} parent=0 // pred_check
    _
  $region7: #{tpu_custom_call.1} parent=0 // pred_check_branch
    %11 = sbr.rel (0) target = $region9
  $region8: #{tpu_custom_call.1} parent=0 // pred_region
    _
  $region9: #{tpu_custom_call.1} parent=0 // pred_fallthru
    _
  // Predicated region
  $region10: #{tpu_custom_call.1} parent=0 // pred_check
    _
  $region11: #{tpu_custom_call.1} parent=0 // pred_check_branch
    %13 = sbr.rel (0) target = $region13
  $region12: #{tpu_custom_call.1} parent=0 // pred_region
    _
  $region13: #{tpu_custom_call.1} parent=0 // pred_fallthru
    _
  %v14 = vld [vmem:[%s0] sm:$0xff]
  %v15 = vld [vmem:[%s0 + $0x8] sm:$0xff]
  %v16 = vld [vmem:[%s2] sm:$0x1]
  %v18 = vlaneseq
  %v19 = vshrl.u32 %v18, 7
  %v20 = vsub.s32 0, %v19
  %v21 = vrot.slane %v16, %v20
  %v23 = vld [vmem:[%s1] sm:$0x1]
  %vm24 = vcmp.eq.s32.totalorder %v14, 0
  %vm25 = vcmp.eq.s32.totalorder %v15, 0
  %v26 = vsel %vm24, 1, 0
  %v27 = vsel %vm25, 1, 0
  %v28 = vcvt.s32.f32 %v26
  %v29 = vcvt.s32.f32 %v27
  %31 = vset.pattern.permute.xlu0 0
  %32 = vperm.xlu0 %31, %v28
  %v33 = vpop.permute.xlu0 %32
  %36 = vset.pattern.permute.xlu0 0
  %37 = vperm.xlu0 %36, %v29
  %v38 = vpop.permute.xlu0 %37
  %v40 = vlaneseq
  %v41 = vshrl.u32 %v40, 7
  %v42 = vsub.s32 0, %v41
  %v43 = vrot.slane %v23, %v42
  %v44 = vmul.f32 %v33, %v43
  %v45 = vmul.f32 %v38, %v43
  %v46 = vadd.f32 %v21, %v44
  %v47 = vadd.f32 %v21, %v45
  %v48 = vld [vmem:[%s1 + $0x1] sm:$0x1]
  %vm49 = vcmp.eq.s32.totalorder %v14, 1
  %vm50 = vcmp.eq.s32.totalorder %v15, 1
  %v51 = vsel %vm49, 1, 0
  %v52 = vsel %vm50, 1, 0
  %v53 = vcvt.s32.f32 %v51
  %v54 = vcvt.s32.f32 %v52
  %56 = vset.pattern.permute.xlu0 0
  %57 = vperm.xlu0 %56, %v53
  %v58 = vpop.permute.xlu0 %57
  %61 = vset.pattern.permute.xlu0 0
  %62 = vperm.xlu0 %61, %v54
  %v63 = vpop.permute.xlu0 %62
  %v65 = vlaneseq
  %v66 = vshrl.u32 %v65, 7
  %v67 = vsub.s32 0, %v66
  %v68 = vrot.slane %v48, %v67
  %v69 = vmul.f32 %v58, %v68
  %v70 = vmul.f32 %v63, %v68
  %v71 = vadd.f32 %v46, %v69
  %v72 = vadd.f32 %v47, %v70
  %v73 = vld [vmem:[%s1 + $0x2] sm:$0x1]
  %vm74 = vcmp.eq.s32.totalorder %v14, 2
  %vm75 = vcmp.eq.s32.totalorder %v15, 2
  %v76 = vsel %vm74, 1, 0
  %v77 = vsel %vm75, 1, 0
  %v78 = vcvt.s32.f32 %v76
  %v79 = vcvt.s32.f32 %v77
  %81 = vset.pattern.permute.xlu0 0
  %82 = vperm.xlu0 %81, %v78
  %v83 = vpop.permute.xlu0 %82
  %86 = vset.pattern.permute.xlu0 0
  %87 = vperm.xlu0 %86, %v79
  %v88 = vpop.permute.xlu0 %87
  %v90 = vlaneseq
  %v91 = vshrl.u32 %v90, 7
  %v92 = vsub.s32 0, %v91
  %v93 = vrot.slane %v73, %v92
  %v94 = vmul.f32 %v83, %v93
  %v95 = vmul.f32 %v88, %v93
  %v96 = vadd.f32 %v71, %v94
  %v97 = vadd.f32 %v72, %v95
  %v98 = vld [vmem:[%s1 + $0x3] sm:$0x1]
  %vm99 = vcmp.eq.s32.totalorder %v14, 3
  %vm100 = vcmp.eq.s32.totalorder %v15, 3
  %v101 = vsel %vm99, 1, 0
  %v102 = vsel %vm100, 1, 0
  %v103 = vcvt.s32.f32 %v101
  %v104 = vcvt.s32.f32 %v102
  %106 = vset.pattern.permute.xlu0 0
  %107 = vperm.xlu0 %106, %v103
  %v108 = vpop.permute.xlu0 %107
  %111 = vset.pattern.permute.xlu0 0
  %112 = vperm.xlu0 %111, %v104
  %v113 = vpop.permute.xlu0 %112
  %v115 = vlaneseq
  %v116 = vshrl.u32 %v115, 7
  %v117 = vsub.s32 0, %v116
  %v118 = vrot.slane %v98, %v117
  %v119 = vmul.f32 %v108, %v118
  %v120 = vmul.f32 %v113, %v118
  %v121 = vadd.f32 %v96, %v119
  %v122 = vadd.f32 %v97, %v120
  %v123 = vld [vmem:[%s1 + $0x4] sm:$0x1]
  %vm124 = vcmp.eq.s32.totalorder %v14, 4
  %vm125 = vcmp.eq.s32.totalorder %v15, 4
  %v126 = vsel %vm124, 1, 0
  %v127 = vsel %vm125, 1, 0
  %v128 = vcvt.s32.f32 %v126
  %v129 = vcvt.s32.f32 %v127
  %131 = vset.pattern.permute.xlu0 0
  %132 = vperm.xlu0 %131, %v128
  %v133 = vpop.permute.xlu0 %132
  %136 = vset.pattern.permute.xlu0 0
  %137 = vperm.xlu0 %136, %v129
  %v138 = vpop.permute.xlu0 %137
  %v140 = vlaneseq
  %v141 = vshrl.u32 %v140, 7
  %v142 = vsub.s32 0, %v141
  %v143 = vrot.slane %v123, %v142
  %v144 = vmul.f32 %v133, %v143
  %v145 = vmul.f32 %v138, %v143
  %v146 = vadd.f32 %v121, %v144
  %v147 = vadd.f32 %v122, %v145
  %v148 = vld [vmem:[%s1 + $0x5] sm:$0x1]
  %vm149 = vcmp.eq.s32.totalorder %v14, 5
  %vm150 = vcmp.eq.s32.totalorder %v15, 5
  %v151 = vsel %vm149, 1, 0
  %v152 = vsel %vm150, 1, 0
  %v153 = vcvt.s32.f32 %v151
  %v154 = vcvt.s32.f32 %v152
  %156 = vset.pattern.permute.xlu0 0
  %157 = vperm.xlu0 %156, %v153
  %v158 = vpop.permute.xlu0 %157
  %161 = vset.pattern.permute.xlu0 0
  %162 = vperm.xlu0 %161, %v154
  %v163 = vpop.permute.xlu0 %162
  %v165 = vlaneseq
  %v166 = vshrl.u32 %v165, 7
  %v167 = vsub.s32 0, %v166
  %v168 = vrot.slane %v148, %v167
  %v169 = vmul.f32 %v158, %v168
  %v170 = vmul.f32 %v163, %v168
  %v171 = vadd.f32 %v146, %v169
  %v172 = vadd.f32 %v147, %v170
  %v173 = vld [vmem:[%s1 + $0x6] sm:$0x1]
  %vm174 = vcmp.eq.s32.totalorder %v14, 6
  %vm175 = vcmp.eq.s32.totalorder %v15, 6
  %v176 = vsel %vm174, 1, 0
  %v177 = vsel %vm175, 1, 0
  %v178 = vcvt.s32.f32 %v176
  %v179 = vcvt.s32.f32 %v177
  %181 = vset.pattern.permute.xlu0 0
  %182 = vperm.xlu0 %181, %v178
  %v183 = vpop.permute.xlu0 %182
  %186 = vset.pattern.permute.xlu0 0
  %187 = vperm.xlu0 %186, %v179
  %v188 = vpop.permute.xlu0 %187
  %v190 = vlaneseq
  %v191 = vshrl.u32 %v190, 7
  %v192 = vsub.s32 0, %v191
  %v193 = vrot.slane %v173, %v192
  %v194 = vmul.f32 %v183, %v193
  %v195 = vmul.f32 %v188, %v193
  %v196 = vadd.f32 %v171, %v194
  %v197 = vadd.f32 %v172, %v195
  %v198 = vld [vmem:[%s1 + $0x7] sm:$0x1]
  %vm199 = vcmp.eq.s32.totalorder %v14, 7
  %vm200 = vcmp.eq.s32.totalorder %v15, 7
  %v201 = vsel %vm199, 1, 0
  %v202 = vsel %vm200, 1, 0
  %v203 = vcvt.s32.f32 %v201
  %v204 = vcvt.s32.f32 %v202
  %206 = vset.pattern.permute.xlu0 0
  %207 = vperm.xlu0 %206, %v203
  %v208 = vpop.permute.xlu0 %207
  %211 = vset.pattern.permute.xlu0 0
  %212 = vperm.xlu0 %211, %v204
  %v213 = vpop.permute.xlu0 %212
  %v215 = vlaneseq
  %v216 = vshrl.u32 %v215, 7
  %v217 = vsub.s32 0, %v216
  %v218 = vrot.slane %v198, %v217
  %v219 = vmul.f32 %v208, %v218
  %v220 = vmul.f32 %v213, %v218
  %v221 = vadd.f32 %v196, %v219
  %v222 = vadd.f32 %v197, %v220
  %v223 = vld [vmem:[%s1 + $0x8] sm:$0x1]
  %vm224 = vcmp.eq.s32.totalorder %v14, 8
  %vm225 = vcmp.eq.s32.totalorder %v15, 8
  %v226 = vsel %vm224, 1, 0
  %v227 = vsel %vm225, 1, 0
  %v228 = vcvt.s32.f32 %v226
  %v229 = vcvt.s32.f32 %v227
  %231 = vset.pattern.permute.xlu0 0
  %232 = vperm.xlu0 %231, %v228
  %v233 = vpop.permute.xlu0 %232
  %236 = vset.pattern.permute.xlu0 0
  %237 = vperm.xlu0 %236, %v229
  %v238 = vpop.permute.xlu0 %237
  %v240 = vlaneseq
  %v241 = vshrl.u32 %v240, 7
  %v242 = vsub.s32 0, %v241
  %v243 = vrot.slane %v223, %v242
  %v244 = vmul.f32 %v233, %v243
  %v245 = vmul.f32 %v238, %v243
  %v246 = vadd.f32 %v221, %v244
  %v247 = vadd.f32 %v222, %v245
  %v248 = vld [vmem:[%s1 + $0x9] sm:$0x1]
  %vm249 = vcmp.eq.s32.totalorder %v14, 9
  %vm250 = vcmp.eq.s32.totalorder %v15, 9
  %v251 = vsel %vm249, 1, 0
  %v252 = vsel %vm250, 1, 0
  %v253 = vcvt.s32.f32 %v251
  %v254 = vcvt.s32.f32 %v252
  %256 = vset.pattern.permute.xlu0 0
  %257 = vperm.xlu0 %256, %v253
  %v258 = vpop.permute.xlu0 %257
  %261 = vset.pattern.permute.xlu0 0
  %262 = vperm.xlu0 %261, %v254
  %v263 = vpop.permute.xlu0 %262
  %v265 = vlaneseq
  %v266 = vshrl.u32 %v265, 7
  %v267 = vsub.s32 0, %v266
  %v268 = vrot.slane %v248, %v267
  %v269 = vmul.f32 %v258, %v268
  %v270 = vmul.f32 %v263, %v268
  %v271 = vadd.f32 %v246, %v269
  %v272 = vadd.f32 %v247, %v270
  %vm273 = vcmask 39936
  %274 = vst.msk [vmem:[%s3] sm:$0xff] %vm273, %v271
  %275 = vst.msk [vmem:[%s3 + $0x8] sm:$0xff] %vm273, %v272
  // Predicated region
  $region14: #{tpu_custom_call.1} parent=0 // pred_check
    _
  $region15: #{tpu_custom_call.1} parent=0 // pred_check_branch
    %277 = sbr.rel (0) target = $region17
  $region16: #{tpu_custom_call.1} parent=0 // pred_region
    _
  $region17: #{tpu_custom_call.1} parent=0 // pred_fallthru
    _
  // Predicated region
  $region18: #{tpu_custom_call.1} parent=0 // pred_check
    _
  $region19: #{tpu_custom_call.1} parent=0 // pred_check_branch
    %279 = sbr.rel (0) target = $region21
  $region20: #{tpu_custom_call.1} parent=0 // pred_region
    _
  $region21: #{tpu_custom_call.1} parent=0 // pred_fallthru
    _

</llo_original>
